<compile_context>
chip_gen: v7x
topology: tpu7x:2x2x1
jax: 0.10.0
libtpu: 0.0.40
codegen_flags: <defaults>
</compile_context>

<pallas_src>
import jax
import jax.numpy as jnp
from jax import lax
from jax.experimental import pallas as pl
from jax.experimental.pallas import tpu as pltpu

_MIB = 1024 * 1024


def _pad_to(x, m):
    return ((x + m - 1) // m) * m


def _tensorcores_per_device():
    """Best-effort TensorCores-per-jax-device (perf hint only; a wrong guess
    never affects correctness)."""
    try:
        kind = jax.devices()[0].device_kind.lower()
    except Exception:
        return 1
    # Dual-TensorCore chips presented behind one jax device (megacore / v7x).
    if any(m in kind for m in ("v4", "v5p", "v7", "7x")):
        return 2
    return 1


def _per_batch_tile_bytes(d1, d2, nc):
    d1p = _pad_to(max(d1, 1), 8)
    pred_row = d1p * _pad_to(d2 * nc, 128) * 4      # lane-dense pred row
    lab_row = d1p * _pad_to(d2, 128) * 4            # label row (lane padded)
    return 2 * (pred_row + lab_row)                 # double-buffered DMA tiles


def _fixed_vmem_bytes(d1, d2, nc):
    d1p = _pad_to(max(d1, 1), 8)
    lanes = d2 * nc
    acc_blk = d1p * _pad_to(d2, 128) * 4            # resident accumulator blk
    sel_like = _pad_to(lanes, 8) * _pad_to(d2, 128) * 4
    return 2 * acc_blk + 3 * sel_like               # acc bufs + iotas + sel


def _pick_tb(b, d1, d2, nc, budget_bytes, want_splits):
    """Largest divisor of b whose tiles fit the budget, preferring a tile
    count that divides evenly across `want_splits` parallel splits."""
    per_batch = _per_batch_tile_bytes(d1, d2, nc)
    avail = max(budget_bytes - _fixed_vmem_bytes(d1, d2, nc), 0)
    tb_max = max(1, avail // per_batch)
    best_any, best_pref = 1, 0
    for cand in range(1, b + 1):
        if b % cand or cand > tb_max:
            continue
        best_any = cand
        if (b // cand) % want_splits == 0:
            best_pref = cand
    return best_pref if best_pref else best_any


def _vmem_limit_bytes(tb, d1, d2, nc):
    est = tb * _per_batch_tile_bytes(d1, d2, nc) + _fixed_vmem_bytes(d1, d2, nc)
    try:
        info = pltpu.get_tpu_info()
        cap = int(getattr(info, "vmem_capacity_bytes", 0)) or 64 * _MIB
    except Exception:
        cap = 64 * _MIB                              # v7x per-TC physical VMEM
    return int(min(max(32 * _MIB, est + 8 * _MIB), cap))


def _make_kernel(tb, d1, d2, nc, tiles_per_split):
    lanes = d2 * nc

    def kernel(cond_ref, pred_ref, label_ref, out_ref):
        s = pl.program_id(0)          # parallel split (one per TensorCore)
        t = pl.program_id(1)          # reduction over this split's batch tiles

        @pl.when(t == 0)
        def _init():
            out_ref[...] = jnp.zeros_like(out_ref)

        base = (s * tiles_per_split + t) * tb        # first batch elem of tile

        # Loop-invariant selection iota (hoisted out of the per-batch loop):
        # rel[l, g] = l - g*nc equals the condition c exactly when lane l is
        # channel c of d2-group g.
        l_idx = lax.broadcasted_iota(jnp.int32, (lanes, d2), 0)
        g_idx = lax.broadcasted_iota(jnp.int32, (lanes, d2), 1)
        rel = l_idx - g_idx * nc

        def body(j, acc):
            c = cond_ref[base + j]                   # scalar int32 from SMEM
            # 0/1 selection matrix: exactly one 1.0 per output column, so
            # pred_row @ sel is a pass-through gather of channel c.
            # TODO(synk): torch indexing would raise for c outside [0, NC);
            # here an out-of-range condition silently selects zeros.
            sel = (rel == c).astype(jnp.float32)
            p = pred_ref[j].astype(jnp.float32)      # (d1, d2*nc), lane-dense
            real = jnp.dot(p, sel, preferred_element_type=jnp.float32)
            diff = real - label_ref[j].astype(jnp.float32)
            return acc + diff * diff

        tile_sum = lax.fori_loop(0, tb, body,
                                 jnp.zeros((d1, d2), jnp.float32),
                                 unroll=min(tb, 8))
        out_ref[0] += tile_sum

    return kernel


def custom_loss(pred, conditions, label, *, tb=None, num_splits=None,
                vmem_budget_bytes=12 * _MIB):
    """Pallas TPU implementation of CustomLoss.forward.

    pred: [B, D1, D2, NC] float, conditions: [B] int, label: [B, D1, D2] float.
    Returns (loss, {}) like the PyTorch module.
    """
    b, d1, d2, nc = pred.shape
    assert label.shape == (b, d1, d2), (label.shape, pred.shape)
    conditions = conditions.astype(jnp.int32)

    want_splits = num_splits if num_splits is not None else _tensorcores_per_device()
    want_splits = max(1, int(want_splits))

    if tb is None:
        tb = _pick_tb(b, d1, d2, nc, vmem_budget_bytes, want_splits)
    # TODO(synk): masked tail tile would lift this divisibility requirement.
    assert b % tb == 0, (b, tb)
    n_tiles = b // tb
    if num_splits is None:
        num_splits = want_splits if n_tiles % want_splits == 0 else 1
    assert n_tiles % num_splits == 0, (n_tiles, num_splits)
    tiles_per_split = n_tiles // num_splits

    lanes = d2 * nc
    pred_flat = pred.reshape(b, d1, lanes)           # free, contiguous reshape

    kernel = _make_kernel(tb, d1, d2, nc, tiles_per_split)

    partials = pl.pallas_call(
        kernel,
        out_shape=jax.ShapeDtypeStruct((num_splits, d1, d2), jnp.float32),
        grid_spec=pltpu.PrefetchScalarGridSpec(
            num_scalar_prefetch=1,
            grid=(num_splits, tiles_per_split),
            in_specs=[
                pl.BlockSpec(
                    (tb, d1, lanes),
                    lambda s, t, cond: (s * tiles_per_split + t, 0, 0)),
                pl.BlockSpec(
                    (tb, d1, d2),
                    lambda s, t, cond: (s * tiles_per_split + t, 0, 0)),
            ],
            out_specs=pl.BlockSpec(
                (1, d1, d2),
                lambda s, t, cond: (s, 0, 0)),
        ),
        compiler_params=pltpu.CompilerParams(
            dimension_semantics=("parallel", "arbitrary"),
            vmem_limit_bytes=_vmem_limit_bytes(tb, d1, d2, nc),
        ),
    )(conditions, pred_flat, label)

    loss = jnp.sum(partials) / jnp.float32(b * d1 * d2)
    # Matches the PyTorch module's return signature: (loss, {})
    return loss, {}


if __name__ == "__main__":
    key = jax.random.PRNGKey(0)
    k_pred, k_label, k_cond = jax.random.split(key, 3)

    B, D1, D2, NC = 8, 8, 16, 8
    pred = jax.random.normal(k_pred, (B, D1, D2, NC), dtype=jnp.float32)
    label = jax.random.normal(k_label, (B, D1, D2), dtype=jnp.float32)
    conditions = jax.random.randint(k_cond, (B,), 0, NC, dtype=jnp.int32)

    # Pure-JAX reference (same semantics as the torch module).
    real_pred = jnp.take_along_axis(
        pred, conditions[:, None, None, None], axis=-1)[..., 0]
    ref = jnp.mean((real_pred - label) ** 2)

    # 1) Default tiling / split policy for the detected chip.
    loss, extras = custom_loss(pred, conditions, label)
    loss = jax.block_until_ready(loss)
    assert extras == {}
    assert jnp.allclose(loss, ref, rtol=1e-5, atol=1e-5), (loss, ref)

    # 2) Multi-tile + 2-way parallel-split path (exercises accumulation across
    #    the "arbitrary" reduction axis and the per-split partial outputs).
    loss2, _ = custom_loss(pred, conditions, label, tb=2, num_splits=2)
    loss2 = jax.block_until_ready(loss2)
    assert jnp.allclose(loss2, ref, rtol=1e-5, atol=1e-5), (loss2, ref)

    print("KERNEL_OK")
</pallas_src>

<mosaic_0001>
module attributes {stable_mosaic.version = 11 : i64} {
  func.func @kernel(%arg0: i32, %arg1: i32, %arg2: memref<8xi32, #tpu.memory_space<smem>>, %arg3: memref<8x8x128xf32, #tpu.memory_space<vmem>>, %arg4: memref<8x8x16xf32, #tpu.memory_space<vmem>>, %arg5: memref<1x8x16xf32, #tpu.memory_space<vmem>>) attributes {dimension_semantics = [#tpu.dimension_semantics<parallel>, #tpu.dimension_semantics<arbitrary>], iteration_bounds = array<i64: 1, 1>, scalar_prefetch = 1 : i64, scratch_operands = 0 : i64, tpu.core_type = #tpu.core_type<tc>, window_params = [{transform_indices = @transform_0, window_bounds = array<i64: 8, 8, 128>}, {transform_indices = @transform_1, window_bounds = array<i64: 8, 8, 16>}, {transform_indices = @transform_2, window_bounds = array<i64: 1, 8, 16>}]} {
    %c0_i32 = arith.constant 0 : i32
    %0 = arith.cmpi eq, %arg1, %c0_i32 : i32
    %1 = arith.extui %0 : i1 to i32
    %c0_i32_0 = arith.constant 0 : i32
    %2 = arith.cmpi ne, %1, %c0_i32_0 : i32
    scf.if %2 {
      %cst_50 = arith.constant 0.000000e+00 : f32
      %154 = vector.broadcast %cst_50 : f32 to vector<1x8x16xf32>
      %c0_51 = arith.constant 0 : index
      %c0_52 = arith.constant 0 : index
      %c0_53 = arith.constant 0 : index
      %155 = vector.load %arg5[%c0_51, %c0_52, %c0_53] : memref<1x8x16xf32, #tpu.memory_space<vmem>>, vector<1x8x16xf32>
      tpu.vector_store %arg5[%c0_51, %c0_52, %c0_53], %154 {strides = array<i32>} : memref<1x8x16xf32, #tpu.memory_space<vmem>>, vector<1x8x16xf32>,
    } else {
    }
    %c1_i32 = arith.constant 1 : i32
    %3 = arith.muli %arg0, %c1_i32 : i32
    %4 = arith.addi %3, %arg1 : i32
    %c8_i32 = arith.constant 8 : i32
    %5 = arith.muli %4, %c8_i32 : i32
    %6 = tpu.iota {dimensions = array<i32: 0>} : vector<128x16xi32>
    %7 = tpu.iota {dimensions = array<i32: 1>} : vector<128x16xi32>
    %c8_i32_1 = arith.constant 8 : i32
    %8 = vector.broadcast %c8_i32_1 : i32 to vector<128x16xi32>
    %9 = arith.muli %7, %8 : vector<128x16xi32>
    %10 = arith.subi %6, %9 : vector<128x16xi32>
    %cst = arith.constant 0.000000e+00 : f32
    %11 = vector.broadcast %cst : f32 to vector<8x16xf32>
    %c0_i32_2 = arith.constant 0 : i32
    %12 = arith.addi %5, %c0_i32_2 : i32
    %13 = arith.index_cast %12 : i32 to index
    %14 = memref.load %arg2[%13] : memref<8xi32, #tpu.memory_space<smem>>
    %15 = vector.broadcast %14 : i32 to vector<128x16xi32>
    %16 = arith.cmpi eq, %10, %15 : vector<128x16xi32>
    %17 = arith.extui %16 : vector<128x16xi1> to vector<128x16xi32>
    %18 = arith.sitofp %17 : vector<128x16xi32> to vector<128x16xf32>
    %19 = arith.index_cast %c0_i32_2 : i32 to index
    %c0 = arith.constant 0 : index
    %c0_3 = arith.constant 0 : index
    %20 = vector.load %arg3[%19, %c0, %c0_3] : memref<8x8x128xf32, #tpu.memory_space<vmem>>, vector<1x8x128xf32>
    %21 = vector.shape_cast %20 : vector<1x8x128xf32> to vector<8x128xf32>
    %cst_4 = arith.constant dense<0.000000e+00> : vector<8x16xf32>
    %22 = tpu.matmul %21, %18, %cst_4 {dimension_numbers = #tpu.dot_dimension_numbers<[1], [0], [0], [1], [0, 0, 1, 1], [], []>} : vector<8x128xf32>, vector<128x16xf32>, vector<8x16xf32> -> vector<8x16xf32>
    %23 = arith.index_cast %c0_i32_2 : i32 to index
    %c0_5 = arith.constant 0 : index
    %c0_6 = arith.constant 0 : index
    %24 = vector.load %arg4[%23, %c0_5, %c0_6] : memref<8x8x16xf32, #tpu.memory_space<vmem>>, vector<1x8x16xf32>
    %25 = vector.shape_cast %24 : vector<1x8x16xf32> to vector<8x16xf32>
    %26 = arith.subf %22, %25 : vector<8x16xf32>
    %27 = arith.mulf %26, %26 : vector<8x16xf32>
    %28 = arith.addf %11, %27 : vector<8x16xf32>
    %c1_i32_7 = arith.constant 1 : i32
    %29 = arith.addi %5, %c1_i32_7 : i32
    %30 = arith.index_cast %29 : i32 to index
    %31 = memref.load %arg2[%30] : memref<8xi32, #tpu.memory_space<smem>>
    %32 = vector.broadcast %31 : i32 to vector<128x16xi32>
    %33 = arith.cmpi eq, %10, %32 : vector<128x16xi32>
    %34 = arith.extui %33 : vector<128x16xi1> to vector<128x16xi32>
    %35 = arith.sitofp %34 : vector<128x16xi32> to vector<128x16xf32>
    %36 = arith.index_cast %c1_i32_7 : i32 to index
    %c0_8 = arith.constant 0 : index
    %c0_9 = arith.constant 0 : index
    %37 = vector.load %arg3[%36, %c0_8, %c0_9] : memref<8x8x128xf32, #tpu.memory_space<vmem>>, vector<1x8x128xf32>
    %38 = vector.shape_cast %37 : vector<1x8x128xf32> to vector<8x128xf32>
    %cst_10 = arith.constant dense<0.000000e+00> : vector<8x16xf32>
    %39 = tpu.matmul %38, %35, %cst_10 {dimension_numbers = #tpu.dot_dimension_numbers<[1], [0], [0], [1], [0, 0, 1, 1], [], []>} : vector<8x128xf32>, vector<128x16xf32>, vector<8x16xf32> -> vector<8x16xf32>
    %40 = arith.index_cast %c1_i32_7 : i32 to index
    %c0_11 = arith.constant 0 : index
    %c0_12 = arith.constant 0 : index
    %41 = vector.load %arg4[%40, %c0_11, %c0_12] : memref<8x8x16xf32, #tpu.memory_space<vmem>>, vector<1x8x16xf32>
    %42 = vector.shape_cast %41 : vector<1x8x16xf32> to vector<8x16xf32>
    %43 = arith.subf %39, %42 : vector<8x16xf32>
    %44 = arith.mulf %43, %43 : vector<8x16xf32>
    %45 = arith.addf %28, %44 : vector<8x16xf32>
    %c2_i32 = arith.constant 2 : i32
    %46 = arith.addi %5, %c2_i32 : i32
    %47 = arith.index_cast %46 : i32 to index
    %48 = memref.load %arg2[%47] : memref<8xi32, #tpu.memory_space<smem>>
    %49 = vector.broadcast %48 : i32 to vector<128x16xi32>
    %50 = arith.cmpi eq, %10, %49 : vector<128x16xi32>
    %51 = arith.extui %50 : vector<128x16xi1> to vector<128x16xi32>
    %52 = arith.sitofp %51 : vector<128x16xi32> to vector<128x16xf32>
    %53 = arith.index_cast %c2_i32 : i32 to index
    %c0_13 = arith.constant 0 : index
    %c0_14 = arith.constant 0 : index
    %54 = vector.load %arg3[%53, %c0_13, %c0_14] : memref<8x8x128xf32, #tpu.memory_space<vmem>>, vector<1x8x128xf32>
    %55 = vector.shape_cast %54 : vector<1x8x128xf32> to vector<8x128xf32>
    %cst_15 = arith.constant dense<0.000000e+00> : vector<8x16xf32>
    %56 = tpu.matmul %55, %52, %cst_15 {dimension_numbers = #tpu.dot_dimension_numbers<[1], [0], [0], [1], [0, 0, 1, 1], [], []>} : vector<8x128xf32>, vector<128x16xf32>, vector<8x16xf32> -> vector<8x16xf32>
    %57 = arith.index_cast %c2_i32 : i32 to index
    %c0_16 = arith.constant 0 : index
    %c0_17 = arith.constant 0 : index
    %58 = vector.load %arg4[%57, %c0_16, %c0_17] : memref<8x8x16xf32, #tpu.memory_space<vmem>>, vector<1x8x16xf32>
    %59 = vector.shape_cast %58 : vector<1x8x16xf32> to vector<8x16xf32>
    %60 = arith.subf %56, %59 : vector<8x16xf32>
    %61 = arith.mulf %60, %60 : vector<8x16xf32>
    %62 = arith.addf %45, %61 : vector<8x16xf32>
    %c3_i32 = arith.constant 3 : i32
    %63 = arith.addi %5, %c3_i32 : i32
    %64 = arith.index_cast %63 : i32 to index
    %65 = memref.load %arg2[%64] : memref<8xi32, #tpu.memory_space<smem>>
    %66 = vector.broadcast %65 : i32 to vector<128x16xi32>
    %67 = arith.cmpi eq, %10, %66 : vector<128x16xi32>
    %68 = arith.extui %67 : vector<128x16xi1> to vector<128x16xi32>
    %69 = arith.sitofp %68 : vector<128x16xi32> to vector<128x16xf32>
    %70 = arith.index_cast %c3_i32 : i32 to index
    %c0_18 = arith.constant 0 : index
    %c0_19 = arith.constant 0 : index
    %71 = vector.load %arg3[%70, %c0_18, %c0_19] : memref<8x8x128xf32, #tpu.memory_space<vmem>>, vector<1x8x128xf32>
    %72 = vector.shape_cast %71 : vector<1x8x128xf32> to vector<8x128xf32>
    %cst_20 = arith.constant dense<0.000000e+00> : vector<8x16xf32>
    %73 = tpu.matmul %72, %69, %cst_20 {dimension_numbers = #tpu.dot_dimension_numbers<[1], [0], [0], [1], [0, 0, 1, 1], [], []>} : vector<8x128xf32>, vector<128x16xf32>, vector<8x16xf32> -> vector<8x16xf32>
    %74 = arith.index_cast %c3_i32 : i32 to index
    %c0_21 = arith.constant 0 : index
    %c0_22 = arith.constant 0 : index
    %75 = vector.load %arg4[%74, %c0_21, %c0_22] : memref<8x8x16xf32, #tpu.memory_space<vmem>>, vector<1x8x16xf32>
    %76 = vector.shape_cast %75 : vector<1x8x16xf32> to vector<8x16xf32>
    %77 = arith.subf %73, %76 : vector<8x16xf32>
    %78 = arith.mulf %77, %77 : vector<8x16xf32>
    %79 = arith.addf %62, %78 : vector<8x16xf32>
    %c4_i32 = arith.constant 4 : i32
    %80 = arith.addi %5, %c4_i32 : i32
    %81 = arith.index_cast %80 : i32 to index
    %82 = memref.load %arg2[%81] : memref<8xi32, #tpu.memory_space<smem>>
    %83 = vector.broadcast %82 : i32 to vector<128x16xi32>
    %84 = arith.cmpi eq, %10, %83 : vector<128x16xi32>
    %85 = arith.extui %84 : vector<128x16xi1> to vector<128x16xi32>
    %86 = arith.sitofp %85 : vector<128x16xi32> to vector<128x16xf32>
    %87 = arith.index_cast %c4_i32 : i32 to index
    %c0_23 = arith.constant 0 : index
    %c0_24 = arith.constant 0 : index
    %88 = vector.load %arg3[%87, %c0_23, %c0_24] : memref<8x8x128xf32, #tpu.memory_space<vmem>>, vector<1x8x128xf32>
    %89 = vector.shape_cast %88 : vector<1x8x128xf32> to vector<8x128xf32>
    %cst_25 = arith.constant dense<0.000000e+00> : vector<8x16xf32>
    %90 = tpu.matmul %89, %86, %cst_25 {dimension_numbers = #tpu.dot_dimension_numbers<[1], [0], [0], [1], [0, 0, 1, 1], [], []>} : vector<8x128xf32>, vector<128x16xf32>, vector<8x16xf32> -> vector<8x16xf32>
    %91 = arith.index_cast %c4_i32 : i32 to index
    %c0_26 = arith.constant 0 : index
    %c0_27 = arith.constant 0 : index
    %92 = vector.load %arg4[%91, %c0_26, %c0_27] : memref<8x8x16xf32, #tpu.memory_space<vmem>>, vector<1x8x16xf32>
    %93 = vector.shape_cast %92 : vector<1x8x16xf32> to vector<8x16xf32>
    %94 = arith.subf %90, %93 : vector<8x16xf32>
    %95 = arith.mulf %94, %94 : vector<8x16xf32>
    %96 = arith.addf %79, %95 : vector<8x16xf32>
    %c5_i32 = arith.constant 5 : i32
    %97 = arith.addi %5, %c5_i32 : i32
    %98 = arith.index_cast %97 : i32 to index
    %99 = memref.load %arg2[%98] : memref<8xi32, #tpu.memory_space<smem>>
    %100 = vector.broadcast %99 : i32 to vector<128x16xi32>
    %101 = arith.cmpi eq, %10, %100 : vector<128x16xi32>
    %102 = arith.extui %101 : vector<128x16xi1> to vector<128x16xi32>
    %103 = arith.sitofp %102 : vector<128x16xi32> to vector<128x16xf32>
    %104 = arith.index_cast %c5_i32 : i32 to index
    %c0_28 = arith.constant 0 : index
    %c0_29 = arith.constant 0 : index
    %105 = vector.load %arg3[%104, %c0_28, %c0_29] : memref<8x8x128xf32, #tpu.memory_space<vmem>>, vector<1x8x128xf32>
    %106 = vector.shape_cast %105 : vector<1x8x128xf32> to vector<8x128xf32>
    %cst_30 = arith.constant dense<0.000000e+00> : vector<8x16xf32>
    %107 = tpu.matmul %106, %103, %cst_30 {dimension_numbers = #tpu.dot_dimension_numbers<[1], [0], [0], [1], [0, 0, 1, 1], [], []>} : vector<8x128xf32>, vector<128x16xf32>, vector<8x16xf32> -> vector<8x16xf32>
    %108 = arith.index_cast %c5_i32 : i32 to index
    %c0_31 = arith.constant 0 : index
    %c0_32 = arith.constant 0 : index
    %109 = vector.load %arg4[%108, %c0_31, %c0_32] : memref<8x8x16xf32, #tpu.memory_space<vmem>>, vector<1x8x16xf32>
    %110 = vector.shape_cast %109 : vector<1x8x16xf32> to vector<8x16xf32>
    %111 = arith.subf %107, %110 : vector<8x16xf32>
    %112 = arith.mulf %111, %111 : vector<8x16xf32>
    %113 = arith.addf %96, %112 : vector<8x16xf32>
    %c6_i32 = arith.constant 6 : i32
    %114 = arith.addi %5, %c6_i32 : i32
    %115 = arith.index_cast %114 : i32 to index
    %116 = memref.load %arg2[%115] : memref<8xi32, #tpu.memory_space<smem>>
    %117 = vector.broadcast %116 : i32 to vector<128x16xi32>
    %118 = arith.cmpi eq, %10, %117 : vector<128x16xi32>
    %119 = arith.extui %118 : vector<128x16xi1> to vector<128x16xi32>
    %120 = arith.sitofp %119 : vector<128x16xi32> to vector<128x16xf32>
    %121 = arith.index_cast %c6_i32 : i32 to index
    %c0_33 = arith.constant 0 : index
    %c0_34 = arith.constant 0 : index
    %122 = vector.load %arg3[%121, %c0_33, %c0_34] : memref<8x8x128xf32, #tpu.memory_space<vmem>>, vector<1x8x128xf32>
    %123 = vector.shape_cast %122 : vector<1x8x128xf32> to vector<8x128xf32>
    %cst_35 = arith.constant dense<0.000000e+00> : vector<8x16xf32>
    %124 = tpu.matmul %123, %120, %cst_35 {dimension_numbers = #tpu.dot_dimension_numbers<[1], [0], [0], [1], [0, 0, 1, 1], [], []>} : vector<8x128xf32>, vector<128x16xf32>, vector<8x16xf32> -> vector<8x16xf32>
    %125 = arith.index_cast %c6_i32 : i32 to index
    %c0_36 = arith.constant 0 : index
    %c0_37 = arith.constant 0 : index
    %126 = vector.load %arg4[%125, %c0_36, %c0_37] : memref<8x8x16xf32, #tpu.memory_space<vmem>>, vector<1x8x16xf32>
    %127 = vector.shape_cast %126 : vector<1x8x16xf32> to vector<8x16xf32>
    %128 = arith.subf %124, %127 : vector<8x16xf32>
    %129 = arith.mulf %128, %128 : vector<8x16xf32>
    %130 = arith.addf %113, %129 : vector<8x16xf32>
    %c7_i32 = arith.constant 7 : i32
    %131 = arith.addi %5, %c7_i32 : i32
    %132 = arith.index_cast %131 : i32 to index
    %133 = memref.load %arg2[%132] : memref<8xi32, #tpu.memory_space<smem>>
    %134 = vector.broadcast %133 : i32 to vector<128x16xi32>
    %135 = arith.cmpi eq, %10, %134 : vector<128x16xi32>
    %136 = arith.extui %135 : vector<128x16xi1> to vector<128x16xi32>
    %137 = arith.sitofp %136 : vector<128x16xi32> to vector<128x16xf32>
    %138 = arith.index_cast %c7_i32 : i32 to index
    %c0_38 = arith.constant 0 : index
    %c0_39 = arith.constant 0 : index
    %139 = vector.load %arg3[%138, %c0_38, %c0_39] : memref<8x8x128xf32, #tpu.memory_space<vmem>>, vector<1x8x128xf32>
    %140 = vector.shape_cast %139 : vector<1x8x128xf32> to vector<8x128xf32>
    %cst_40 = arith.constant dense<0.000000e+00> : vector<8x16xf32>
    %141 = tpu.matmul %140, %137, %cst_40 {dimension_numbers = #tpu.dot_dimension_numbers<[1], [0], [0], [1], [0, 0, 1, 1], [], []>} : vector<8x128xf32>, vector<128x16xf32>, vector<8x16xf32> -> vector<8x16xf32>
    %142 = arith.index_cast %c7_i32 : i32 to index
    %c0_41 = arith.constant 0 : index
    %c0_42 = arith.constant 0 : index
    %143 = vector.load %arg4[%142, %c0_41, %c0_42] : memref<8x8x16xf32, #tpu.memory_space<vmem>>, vector<1x8x16xf32>
    %144 = vector.shape_cast %143 : vector<1x8x16xf32> to vector<8x16xf32>
    %145 = arith.subf %141, %144 : vector<8x16xf32>
    %146 = arith.mulf %145, %145 : vector<8x16xf32>
    %147 = arith.addf %130, %146 : vector<8x16xf32>
    %c8_i32_43 = arith.constant 8 : i32
    %c0_44 = arith.constant 0 : index
    %c0_45 = arith.constant 0 : index
    %c0_46 = arith.constant 0 : index
    %148 = vector.load %arg5[%c0_44, %c0_45, %c0_46] : memref<1x8x16xf32, #tpu.memory_space<vmem>>, vector<1x8x16xf32>
    %149 = vector.shape_cast %148 : vector<1x8x16xf32> to vector<8x16xf32>
    %150 = arith.addf %149, %147 : vector<8x16xf32>
    %c0_47 = arith.constant 0 : index
    %c0_48 = arith.constant 0 : index
    %c0_49 = arith.constant 0 : index
    %151 = vector.load %arg5[%c0_47, %c0_48, %c0_49] : memref<1x8x16xf32, #tpu.memory_space<vmem>>, vector<1x8x16xf32>
    %152 = vector.shape_cast %151 : vector<1x8x16xf32> to vector<8x16xf32>
    %153 = vector.shape_cast %150 : vector<8x16xf32> to vector<1x8x16xf32>
    tpu.vector_store %arg5[%c0_47, %c0_48, %c0_49], %153 {strides = array<i32>} : memref<1x8x16xf32, #tpu.memory_space<vmem>>, vector<1x8x16xf32>,
    return
  }
  func.func @transform_0(%arg0: i32, %arg1: i32, %arg2: memref<8xi32, #tpu.memory_space<smem>>) -> (i32, i32, i32) {
    %c1_i32 = arith.constant 1 : i32
    %0 = arith.muli %arg0, %c1_i32 : i32
    %1 = arith.addi %0, %arg1 : i32
    %c0_i32 = arith.constant 0 : i32
    %c0_i32_0 = arith.constant 0 : i32
    %c0_i32_1 = arith.constant 0 : i32
    return %1, %c0_i32, %c0_i32_0 : i32, i32, i32
  }
  func.func @transform_1(%arg0: i32, %arg1: i32, %arg2: memref<8xi32, #tpu.memory_space<smem>>) -> (i32, i32, i32) {
    %c1_i32 = arith.constant 1 : i32
    %0 = arith.muli %arg0, %c1_i32 : i32
    %1 = arith.addi %0, %arg1 : i32
    %c0_i32 = arith.constant 0 : i32
    %c0_i32_0 = arith.constant 0 : i32
    %c0_i32_1 = arith.constant 0 : i32
    return %1, %c0_i32, %c0_i32_0 : i32, i32, i32
  }
  func.func @transform_2(%arg0: i32, %arg1: i32, %arg2: memref<8xi32, #tpu.memory_space<smem>>) -> (i32, i32, i32) {
    %c0_i32 = arith.constant 0 : i32
    %c0_i32_0 = arith.constant 0 : i32
    %c0_i32_1 = arith.constant 0 : i32
    return %arg0, %c0_i32, %c0_i32_0 : i32, i32, i32
  }
}

</mosaic_0001>

<llo_original>
// kernel: tpu_custom_call.1
$region0: #{tpu_custom_call.1}
  #allocation0 [shape = 'u32[]', space=smem, size = 0x4, offset = 0x4, fixed_abs, tag = 'smem constant byte address 0x4 - core index']
  #allocation1 [shape = 'u32[144,128]{1,0:T(1,128)}', space=vmem, size = 0x12000, scoped, tag = 'internal scratch']
  #allocation2 [shape = 's32[1]{0}', space=sflag, size = 0x4, scoped, tag = 'scoped memory for tpu_custom_call.1']
  #allocation3 [shape = 'u8[512]{0}', space=smem, size = 0x200, scoped, tag = 'prefetched SMEM operand 0']
  %s0 = inlined_call_operand.hbm [shape: s32[8], index: 0, kind: input, shape index: {}]
  %s1 = inlined_call_operand.hbm [shape: f32[8,8,128], index: 1, kind: input, shape index: {}]
  %s2 = inlined_call_operand.hbm [shape: f32[8,8,16], index: 2, kind: input, shape index: {}]
  %s3 = inlined_call_operand.hbm [shape: f32[1,8,16], index: 3, kind: output, shape index: {}]
  %s4 = sld [smem:[#allocation0]]
  $region30: #{tpu_custom_call.1} parent=0
    _
  %s6 = ssub.s32 1, %s4
  %s7 = scalar_select 0, %s6, %s4
  %9 = dma.hbm_to_smem %s0, 16, [#allocation3], [#allocation2]
  %10 = dma.done [#allocation2], 16
  %11 = sfence
  $region1: #{tpu_custom_call.1} parent=0
    #allocation4 [shape = 'u8[32768]{0}', space=vmem, size = 0x8000, scoped, tag = 'input window, operand 1, single buffered']
    #allocation5 [shape = 's32[1]{0}', space=sflag, size = 0x4, scoped, tag = 'scoped memory for tpu_custom_call.1']
    #allocation6 [shape = 's32[1]{0}', space=sflag, size = 0x4, scoped, tag = 'scoped memory for tpu_custom_call.1']
    #allocation7 [shape = 'u8[32768]{0}', space=vmem, size = 0x8000, scoped, tag = 'input window, operand 2, single buffered']
    #allocation8 [shape = 's32[1]{0}', space=sflag, size = 0x4, scoped, tag = 'scoped memory for tpu_custom_call.1']
    #allocation9 [shape = 'u8[4096]{0}', space=vmem, size = 0x1000, scoped, tag = 'output window, operand 0, single buffered']
    %12 = vsyncpa [#allocation5], 0
    %13 = vsyncpa [#allocation8], 0
    %14 = vsyncpa [#allocation6], 0
    // Predicated region
    $region2: #{tpu_custom_call.1} parent=1 // pred_check
      _
    $region3: #{tpu_custom_call.1} parent=1 // pred_check_branch
      %16 = sbr.rel (0) target = $region5
    $region4: #{tpu_custom_call.1} parent=1 // pred_region
      %s17 = sadd.s32 0, 0
      %s18 = smul.u32 8, %s17
      %s20 = ssub.s32 1024, 1024
      %21 = vsyncadd [#allocation5], %s20
      %s22 = smul.addr %s18, 128
      %s23 = scalar_lea.hbm %s1, %s22
      %s24 = sshll.u32 [#allocation4], 4
      %s25 = int_to_ptr.vmem [resolvable:$true] %s24
      %30 = dma.hbm_to_vmem [thread:$0]  %s23, 1024, %s25, [#allocation5], 128, 128, 8
    $region5: #{tpu_custom_call.1} parent=1 // pred_fallthru
      _
    // Predicated region
    $region6: #{tpu_custom_call.1} parent=1 // pred_check
      _
    $region7: #{tpu_custom_call.1} parent=1 // pred_check_branch
      %32 = sbr.rel (0) target = $region9
    $region8: #{tpu_custom_call.1} parent=1 // pred_region
      %s33 = sadd.s32 0, 0
      %s34 = smul.u32 8, %s33
      %s36 = ssub.s32 1024, 1024
      %37 = vsyncadd [#allocation8], %s36
      %s38 = smul.addr %s34, 128
      %s39 = scalar_lea.hbm %s2, %s38
      %s40 = sshll.u32 [#allocation7], 4
      %s41 = int_to_ptr.vmem [resolvable:$true] %s40
      %46 = dma.hbm_to_vmem [thread:$0]  %s39, 1024, %s41, [#allocation8], 128, 128, 8
    $region9: #{tpu_custom_call.1} parent=1 // pred_fallthru
      _
    // Predicated region
    $region10: #{tpu_custom_call.1} parent=1 // pred_check
      _
    $region11: #{tpu_custom_call.1} parent=1 // pred_check_branch
      %48 = sbr.rel (0) target = $region13
    $region12: #{tpu_custom_call.1} parent=1 // pred_region
      %49 = dma.done [#allocation5], 1024
    $region13: #{tpu_custom_call.1} parent=1 // pred_fallthru
      _
    // Predicated region
    $region14: #{tpu_custom_call.1} parent=1 // pred_check
      _
    $region15: #{tpu_custom_call.1} parent=1 // pred_check_branch
      %51 = sbr.rel (0) target = $region17
    $region16: #{tpu_custom_call.1} parent=1 // pred_region
      %52 = dma.done [#allocation8], 1024
    $region17: #{tpu_custom_call.1} parent=1 // pred_fallthru
      _
    %s53 = sadd.s32 0, 0
    %s54 = smul.u32 8, %s53
    %s55 = sadd.s32 0, 0
    %s56 = smul.u32 8, %s55
    %p57 = scmp.eq.s32.totalorder 0, 0
    // Predicated region
    $region18: #{tpu_custom_call.1} parent=1 // pred_check
      %p58 = pneg %p57
    $region19: #{tpu_custom_call.1} parent=1 // pred_check_branch
      %60 = sbr.rel (%p58) target = $region21
    $region20: #{tpu_custom_call.1} parent=1 // pred_region
      %vm61 = vcmask 130048
      %62 = vst.msk [vmem:[#allocation9] sm:$0xff] %vm61, 0.0
    $region21: #{tpu_custom_call.1} parent=1 // pred_fallthru
      _
    %s63 = sadd.s32 0, 0
    %s64 = smul.u32 %s63, 8
    %v65 = vlaneseq
    %v66 = vshrl.u32 %v65, 7
    %v67 = vadd.s32 %v66, 8
    %v68 = vadd.s32 %v66, 16
    %v69 = vadd.s32 %v66, 24
    %v70 = vadd.s32 %v66, 32
    %v71 = vadd.s32 %v66, 40
    %v72 = vadd.s32 %v66, 48
    %v73 = vadd.s32 %v66, 56
    %v74 = vadd.s32 %v66, 64
    %v75 = vadd.s32 %v66, 72
    %v76 = vadd.s32 %v66, 80
    %v77 = vadd.s32 %v66, 88
    %v78 = vadd.s32 %v66, 96
    %v79 = vadd.s32 %v66, 104
    %v80 = vadd.s32 %v66, 112
    %v81 = vadd.s32 %v66, 120
    %v82 = vlaneseq
    %v83 = vand.u32 %v82, 127
    %v84 = vmul.u32 %v83, 8
    %v85 = vsub.s32 %v66, %v84
    %v86 = vsub.s32 %v67, %v84
    %v87 = vsub.s32 %v68, %v84
    %v88 = vsub.s32 %v69, %v84
    %v89 = vsub.s32 %v70, %v84
    %v90 = vsub.s32 %v71, %v84
    %v91 = vsub.s32 %v72, %v84
    %v92 = vsub.s32 %v73, %v84
    %v93 = vsub.s32 %v74, %v84
    %v94 = vsub.s32 %v75, %v84
    %v95 = vsub.s32 %v76, %v84
    %v96 = vsub.s32 %v77, %v84
    %v97 = vsub.s32 %v78, %v84
    %v98 = vsub.s32 %v79, %v84
    %v99 = vsub.s32 %v80, %v84
    %v100 = vsub.s32 %v81, %v84
    %s101 = sld [smem:[#allocation3 + %s64]]
    %v102 = vstv %s101
    %vm103 = vcmp.eq.s32.totalorder %v85, %v102
    %vm104 = vcmp.eq.s32.totalorder %v86, %v102
    %vm105 = vcmp.eq.s32.totalorder %v87, %v102
    %vm106 = vcmp.eq.s32.totalorder %v88, %v102
    %vm107 = vcmp.eq.s32.totalorder %v89, %v102
    %vm108 = vcmp.eq.s32.totalorder %v90, %v102
    %vm109 = vcmp.eq.s32.totalorder %v91, %v102
    %vm110 = vcmp.eq.s32.totalorder %v92, %v102
    %vm111 = vcmp.eq.s32.totalorder %v93, %v102
    %vm112 = vcmp.eq.s32.totalorder %v94, %v102
    %vm113 = vcmp.eq.s32.totalorder %v95, %v102
    %vm114 = vcmp.eq.s32.totalorder %v96, %v102
    %vm115 = vcmp.eq.s32.totalorder %v97, %v102
    %vm116 = vcmp.eq.s32.totalorder %v98, %v102
    %vm117 = vcmp.eq.s32.totalorder %v99, %v102
    %vm118 = vcmp.eq.s32.totalorder %v100, %v102
    %v119 = vsel %vm103, 1, 0
    %v120 = vsel %vm104, 1, 0
    %v121 = vsel %vm105, 1, 0
    %v122 = vsel %vm106, 1, 0
    %v123 = vsel %vm107, 1, 0
    %v124 = vsel %vm108, 1, 0
    %v125 = vsel %vm109, 1, 0
    %v126 = vsel %vm110, 1, 0
    %v127 = vsel %vm111, 1, 0
    %v128 = vsel %vm112, 1, 0
    %v129 = vsel %vm113, 1, 0
    %v130 = vsel %vm114, 1, 0
    %v131 = vsel %vm115, 1, 0
    %v132 = vsel %vm116, 1, 0
    %v133 = vsel %vm117, 1, 0
    %v134 = vsel %vm118, 1, 0
    %v135 = vcvt.s32.f32 %v119
    %v136 = vcvt.s32.f32 %v120
    %v137 = vcvt.s32.f32 %v121
    %v138 = vcvt.s32.f32 %v122
    %v139 = vcvt.s32.f32 %v123
    %v140 = vcvt.s32.f32 %v124
    %v141 = vcvt.s32.f32 %v125
    %v142 = vcvt.s32.f32 %v126
    %v143 = vcvt.s32.f32 %v127
    %v144 = vcvt.s32.f32 %v128
    %v145 = vcvt.s32.f32 %v129
    %v146 = vcvt.s32.f32 %v130
    %v147 = vcvt.s32.f32 %v131
    %v148 = vcvt.s32.f32 %v132
    %v149 = vcvt.s32.f32 %v133
    %v150 = vcvt.s32.f32 %v134
    %v151 = vld [vmem:[#allocation4] sm:$0xff]
    %152 = vmatprep.subr.mxu0 0.0
    %153 = vmatpush1.msra.mxu0 %v135
    %154 = vmatprep.subr.mxu0 0.0
    %155 = vmatpush1.msra.mxu0 %v136
    %156 = vmatprep.subr.mxu0 0.0
    %157 = vmatpush1.msra.mxu0 %v137
    %158 = vmatprep.subr.mxu0 0.0
    %159 = vmatpush1.msra.mxu0 %v138
    %160 = vmatprep.subr.mxu0 0.0
    %161 = vmatpush1.msra.mxu0 %v139
    %162 = vmatprep.subr.mxu0 0.0
    %163 = vmatpush1.msra.mxu0 %v140
    %164 = vmatprep.subr.mxu0 0.0
    %165 = vmatpush1.msra.mxu0 %v141
    %166 = vmatprep.subr.mxu0 0.0
    %167 = vmatpush1.msra.mxu0 %v142
    %168 = vmatprep.subr.mxu0 0.0
    %169 = vmatpush1.msra.mxu0 %v143
    %170 = vmatprep.subr.mxu0 0.0
    %171 = vmatpush1.msra.mxu0 %v144
    %172 = vmatprep.subr.mxu0 0.0
    %173 = vmatpush1.msra.mxu0 %v145
    %174 = vmatprep.subr.mxu0 0.0
    %175 = vmatpush1.msra.mxu0 %v146
    %176 = vmatprep.subr.mxu0 0.0
    %177 = vmatpush1.msra.mxu0 %v147
    %178 = vmatprep.subr.mxu0 0.0
    %179 = vmatpush1.msra.mxu0 %v148
    %180 = vmatprep.subr.mxu0 0.0
    %181 = vmatpush1.msra.mxu0 %v149
    %182 = vmatprep.subr.mxu0 0.0
    %183 = vmatpush1.msra.mxu0 %v150
    %184 = vmatprep.subr.mxu0 0.0
    %185 = vmatpush1.msra.mxu0 0.0
    %186 = vmatprep.subr.mxu0 0.0
    %187 = vmatpush1.msra.mxu0 0.0
    %188 = vmatprep.subr.mxu0 0.0
    %189 = vmatpush1.msra.mxu0 0.0
    %190 = vmatprep.subr.mxu0 0.0
    %191 = vmatpush1.msra.mxu0 0.0
    %192 = vmatprep.subr.mxu0 0.0
    %193 = vmatpush1.msra.mxu0 0.0
    %194 = vmatprep.subr.mxu0 0.0
    %195 = vmatpush1.msra.mxu0 0.0
    %196 = vmatprep.subr.mxu0 0.0
    %197 = vmatpush1.msra.mxu0 0.0
    %198 = vmatprep.subr.mxu0 0.0
    %199 = vmatpush1.msra.mxu0 0.0
    %200 = vmatprep.subr.mxu0 0.0
    %201 = vmatpush1.msra.mxu0 0.0
    %202 = vmatprep.subr.mxu0 0.0
    %203 = vmatpush1.msra.mxu0 0.0
    %204 = vmatprep.subr.mxu0 0.0
    %205 = vmatpush1.msra.mxu0 0.0
    %206 = vmatprep.subr.mxu0 0.0
    %207 = vmatpush1.msra.mxu0 0.0
    %208 = vmatprep.subr.mxu0 0.0
    %209 = vmatpush1.msra.mxu0 0.0
    %210 = vmatprep.subr.mxu0 0.0
    %211 = vmatpush1.msra.mxu0 0.0
    %212 = vmatprep.subr.mxu0 0.0
    %213 = vmatpush1.msra.mxu0 0.0
    %214 = vmatprep.subr.mxu0 0.0
    %215 = vmatpush1.msra.mxu0 0.0
    %216 = vmatprep.mubr.f32.mxu0 0.0
    %217 = vmatmul.mubr.f32.gmra.mrb[0].mxu0 %v151
    %v218 = vpop.f32.mrb[0].mxu0
    %v219 = vadd.f32 0.0, %v218
    %v220 = vpop.f32.mrb[0].mxu0
    %221 = vdwg.mxu0
    %v222 = vld [vmem:[#allocation7] sm:$0xff]
    %v223 = vsub.f32 %v219, %v222
    %v224 = vmul.f32 %v223, %v223
    %v225 = vadd.f32 %v224, 0.0
    %s226 = sadd.s32 %s64, 1
    %s227 = sld [smem:[#allocation3 + %s226]]
    %v228 = vstv %s227
    %vm229 = vcmp.eq.s32.totalorder %v85, %v228
    %vm230 = vcmp.eq.s32.totalorder %v86, %v228
    %vm231 = vcmp.eq.s32.totalorder %v87, %v228
    %vm232 = vcmp.eq.s32.totalorder %v88, %v228
    %vm233 = vcmp.eq.s32.totalorder %v89, %v228
    %vm234 = vcmp.eq.s32.totalorder %v90, %v228
    %vm235 = vcmp.eq.s32.totalorder %v91, %v228
    %vm236 = vcmp.eq.s32.totalorder %v92, %v228
    %vm237 = vcmp.eq.s32.totalorder %v93, %v228
    %vm238 = vcmp.eq.s32.totalorder %v94, %v228
    %vm239 = vcmp.eq.s32.totalorder %v95, %v228
    %vm240 = vcmp.eq.s32.totalorder %v96, %v228
    %vm241 = vcmp.eq.s32.totalorder %v97, %v228
    %vm242 = vcmp.eq.s32.totalorder %v98, %v228
    %vm243 = vcmp.eq.s32.totalorder %v99, %v228
    %vm244 = vcmp.eq.s32.totalorder %v100, %v228
    %v245 = vsel %vm229, 1, 0
    %v246 = vsel %vm230, 1, 0
    %v247 = vsel %vm231, 1, 0
    %v248 = vsel %vm232, 1, 0
    %v249 = vsel %vm233, 1, 0
    %v250 = vsel %vm234, 1, 0
    %v251 = vsel %vm235, 1, 0
    %v252 = vsel %vm236, 1, 0
    %v253 = vsel %vm237, 1, 0
    %v254 = vsel %vm238, 1, 0
    %v255 = vsel %vm239, 1, 0
    %v256 = vsel %vm240, 1, 0
    %v257 = vsel %vm241, 1, 0
    %v258 = vsel %vm242, 1, 0
    %v259 = vsel %vm243, 1, 0
    %v260 = vsel %vm244, 1, 0
    %v261 = vcvt.s32.f32 %v245
    %v262 = vcvt.s32.f32 %v246
    %v263 = vcvt.s32.f32 %v247
    %v264 = vcvt.s32.f32 %v248
    %v265 = vcvt.s32.f32 %v249
    %v266 = vcvt.s32.f32 %v250
    %v267 = vcvt.s32.f32 %v251
    %v268 = vcvt.s32.f32 %v252
    %v269 = vcvt.s32.f32 %v253
    %v270 = vcvt.s32.f32 %v254
    %v271 = vcvt.s32.f32 %v255
    %v272 = vcvt.s32.f32 %v256
    %v273 = vcvt.s32.f32 %v257
    %v274 = vcvt.s32.f32 %v258
    %v275 = vcvt.s32.f32 %v259
    %v276 = vcvt.s32.f32 %v260
    %s277 = scalar_lea.vmem [#allocation4], 8
    %v278 = vld [vmem:[%s277] sm:$0xff]
    %279 = vmatprep.subr.mxu0 0.0
    %280 = vmatpush1.msra.mxu0 %v261
    %281 = vmatprep.subr.mxu0 0.0
    %282 = vmatpush1.msra.mxu0 %v262
    %283 = vmatprep.subr.mxu0 0.0
    %284 = vmatpush1.msra.mxu0 %v263
    %285 = vmatprep.subr.mxu0 0.0
    %286 = vmatpush1.msra.mxu0 %v264
    %287 = vmatprep.subr.mxu0 0.0
    %288 = vmatpush1.msra.mxu0 %v265
    %289 = vmatprep.subr.mxu0 0.0
    %290 = vmatpush1.msra.mxu0 %v266
    %291 = vmatprep.subr.mxu0 0.0
    %292 = vmatpush1.msra.mxu0 %v267
    %293 = vmatprep.subr.mxu0 0.0
    %294 = vmatpush1.msra.mxu0 %v268
    %295 = vmatprep.subr.mxu0 0.0
    %296 = vmatpush1.msra.mxu0 %v269
    %297 = vmatprep.subr.mxu0 0.0
    %298 = vmatpush1.msra.mxu0 %v270
    %299 = vmatprep.subr.mxu0 0.0
    %300 = vmatpush1.msra.mxu0 %v271
    %301 = vmatprep.subr.mxu0 0.0
    %302 = vmatpush1.msra.mxu0 %v272
    %303 = vmatprep.subr.mxu0 0.0
    %304 = vmatpush1.msra.mxu0 %v273
    %305 = vmatprep.subr.mxu0 0.0
    %306 = vmatpush1.msra.mxu0 %v274
    %307 = vmatprep.subr.mxu0 0.0
    %308 = vmatpush1.msra.mxu0 %v275
    %309 = vmatprep.subr.mxu0 0.0
    %310 = vmatpush1.msra.mxu0 %v276
    %311 = vmatprep.subr.mxu0 0.0
    %312 = vmatpush1.msra.mxu0 0.0
    %313 = vmatprep.subr.mxu0 0.0
    %314 = vmatpush1.msra.mxu0 0.0
    %315 = vmatprep.subr.mxu0 0.0
    %316 = vmatpush1.msra.mxu0 0.0
    %317 = vmatprep.subr.mxu0 0.0
    %318 = vmatpush1.msra.mxu0 0.0
    %319 = vmatprep.subr.mxu0 0.0
    %320 = vmatpush1.msra.mxu0 0.0
    %321 = vmatprep.subr.mxu0 0.0
    %322 = vmatpush1.msra.mxu0 0.0
    %323 = vmatprep.subr.mxu0 0.0
    %324 = vmatpush1.msra.mxu0 0.0
    %325 = vmatprep.subr.mxu0 0.0
    %326 = vmatpush1.msra.mxu0 0.0
    %327 = vmatprep.subr.mxu0 0.0
    %328 = vmatpush1.msra.mxu0 0.0
    %329 = vmatprep.subr.mxu0 0.0
    %330 = vmatpush1.msra.mxu0 0.0
    %331 = vmatprep.subr.mxu0 0.0
    %332 = vmatpush1.msra.mxu0 0.0
    %333 = vmatprep.subr.mxu0 0.0
    %334 = vmatpush1.msra.mxu0 0.0
    %335 = vmatprep.subr.mxu0 0.0
    %336 = vmatpush1.msra.mxu0 0.0
    %337 = vmatprep.subr.mxu0 0.0
    %338 = vmatpush1.msra.mxu0 0.0
    %339 = vmatprep.subr.mxu0 0.0
    %340 = vmatpush1.msra.mxu0 0.0
    %341 = vmatprep.subr.mxu0 0.0
    %342 = vmatpush1.msra.mxu0 0.0
    %343 = vmatprep.mubr.f32.mxu0 0.0
    %344 = vmatmul.mubr.f32.gmra.mrb[0].mxu0 %v278
    %v345 = vpop.f32.mrb[0].mxu0
    %v346 = vadd.f32 0.0, %v345
    %v347 = vpop.f32.mrb[0].mxu0
    %348 = vdwg.mxu0
    %s349 = scalar_lea.vmem [#allocation7], 8
    %v350 = vld [vmem:[%s349] sm:$0xff]
    %v351 = vsub.f32 %v346, %v350
    %v352 = vmul.f32 %v351, %v351
    %v353 = vadd.f32 %v225, %v352
    %s354 = sadd.s32 %s64, 2
    %s355 = sld [smem:[#allocation3 + %s354]]
    %v356 = vstv %s355
    %vm357 = vcmp.eq.s32.totalorder %v85, %v356
    %vm358 = vcmp.eq.s32.totalorder %v86, %v356
    %vm359 = vcmp.eq.s32.totalorder %v87, %v356
    %vm360 = vcmp.eq.s32.totalorder %v88, %v356
    %vm361 = vcmp.eq.s32.totalorder %v89, %v356
    %vm362 = vcmp.eq.s32.totalorder %v90, %v356
    %vm363 = vcmp.eq.s32.totalorder %v91, %v356
    %vm364 = vcmp.eq.s32.totalorder %v92, %v356
    %vm365 = vcmp.eq.s32.totalorder %v93, %v356
    %vm366 = vcmp.eq.s32.totalorder %v94, %v356
    %vm367 = vcmp.eq.s32.totalorder %v95, %v356
    %vm368 = vcmp.eq.s32.totalorder %v96, %v356
    %vm369 = vcmp.eq.s32.totalorder %v97, %v356
    %vm370 = vcmp.eq.s32.totalorder %v98, %v356
    %vm371 = vcmp.eq.s32.totalorder %v99, %v356
    %vm372 = vcmp.eq.s32.totalorder %v100, %v356
    %v373 = vsel %vm357, 1, 0
    %v374 = vsel %vm358, 1, 0
    %v375 = vsel %vm359, 1, 0
    %v376 = vsel %vm360, 1, 0
    %v377 = vsel %vm361, 1, 0
    %v378 = vsel %vm362, 1, 0
    %v379 = vsel %vm363, 1, 0
    %v380 = vsel %vm364, 1, 0
    %v381 = vsel %vm365, 1, 0
    %v382 = vsel %vm366, 1, 0
    %v383 = vsel %vm367, 1, 0
    %v384 = vsel %vm368, 1, 0
    %v385 = vsel %vm369, 1, 0
    %v386 = vsel %vm370, 1, 0
    %v387 = vsel %vm371, 1, 0
    %v388 = vsel %vm372, 1, 0
    %v389 = vcvt.s32.f32 %v373
    %v390 = vcvt.s32.f32 %v374
    %v391 = vcvt.s32.f32 %v375
    %v392 = vcvt.s32.f32 %v376
    %v393 = vcvt.s32.f32 %v377
    %v394 = vcvt.s32.f32 %v378
    %v395 = vcvt.s32.f32 %v379
    %v396 = vcvt.s32.f32 %v380
    %v397 = vcvt.s32.f32 %v381
    %v398 = vcvt.s32.f32 %v382
    %v399 = vcvt.s32.f32 %v383
    %v400 = vcvt.s32.f32 %v384
    %v401 = vcvt.s32.f32 %v385
    %v402 = vcvt.s32.f32 %v386
    %v403 = vcvt.s32.f32 %v387
    %v404 = vcvt.s32.f32 %v388
    %s405 = scalar_lea.vmem [#allocation4], 16
    %v406 = vld [vmem:[%s405] sm:$0xff]
    %407 = vmatprep.subr.mxu0 0.0
    %408 = vmatpush1.msra.mxu0 %v389
    %409 = vmatprep.subr.mxu0 0.0
    %410 = vmatpush1.msra.mxu0 %v390
    %411 = vmatprep.subr.mxu0 0.0
    %412 = vmatpush1.msra.mxu0 %v391
    %413 = vmatprep.subr.mxu0 0.0
    %414 = vmatpush1.msra.mxu0 %v392
    %415 = vmatprep.subr.mxu0 0.0
    %416 = vmatpush1.msra.mxu0 %v393
    %417 = vmatprep.subr.mxu0 0.0
    %418 = vmatpush1.msra.mxu0 %v394
    %419 = vmatprep.subr.mxu0 0.0
    %420 = vmatpush1.msra.mxu0 %v395
    %421 = vmatprep.subr.mxu0 0.0
    %422 = vmatpush1.msra.mxu0 %v396
    %423 = vmatprep.subr.mxu0 0.0
    %424 = vmatpush1.msra.mxu0 %v397
    %425 = vmatprep.subr.mxu0 0.0
    %426 = vmatpush1.msra.mxu0 %v398
    %427 = vmatprep.subr.mxu0 0.0
    %428 = vmatpush1.msra.mxu0 %v399
    %429 = vmatprep.subr.mxu0 0.0
    %430 = vmatpush1.msra.mxu0 %v400
    %431 = vmatprep.subr.mxu0 0.0
    %432 = vmatpush1.msra.mxu0 %v401
    %433 = vmatprep.subr.mxu0 0.0
    %434 = vmatpush1.msra.mxu0 %v402
    %435 = vmatprep.subr.mxu0 0.0
    %436 = vmatpush1.msra.mxu0 %v403
    %437 = vmatprep.subr.mxu0 0.0
    %438 = vmatpush1.msra.mxu0 %v404
    %439 = vmatprep.subr.mxu0 0.0
    %440 = vmatpush1.msra.mxu0 0.0
    %441 = vmatprep.subr.mxu0 0.0
    %442 = vmatpush1.msra.mxu0 0.0
    %443 = vmatprep.subr.mxu0 0.0
    %444 = vmatpush1.msra.mxu0 0.0
    %445 = vmatprep.subr.mxu0 0.0
    %446 = vmatpush1.msra.mxu0 0.0
    %447 = vmatprep.subr.mxu0 0.0
    %448 = vmatpush1.msra.mxu0 0.0
    %449 = vmatprep.subr.mxu0 0.0
    %450 = vmatpush1.msra.mxu0 0.0
    %451 = vmatprep.subr.mxu0 0.0
    %452 = vmatpush1.msra.mxu0 0.0
    %453 = vmatprep.subr.mxu0 0.0
    %454 = vmatpush1.msra.mxu0 0.0
    %455 = vmatprep.subr.mxu0 0.0
    %456 = vmatpush1.msra.mxu0 0.0
    %457 = vmatprep.subr.mxu0 0.0
    %458 = vmatpush1.msra.mxu0 0.0
    %459 = vmatprep.subr.mxu0 0.0
    %460 = vmatpush1.msra.mxu0 0.0
    %461 = vmatprep.subr.mxu0 0.0
    %462 = vmatpush1.msra.mxu0 0.0
    %463 = vmatprep.subr.mxu0 0.0
    %464 = vmatpush1.msra.mxu0 0.0
    %465 = vmatprep.subr.mxu0 0.0
    %466 = vmatpush1.msra.mxu0 0.0
    %467 = vmatprep.subr.mxu0 0.0
    %468 = vmatpush1.msra.mxu0 0.0
    %469 = vmatprep.subr.mxu0 0.0
    %470 = vmatpush1.msra.mxu0 0.0
    %471 = vmatprep.mubr.f32.mxu0 0.0
    %472 = vmatmul.mubr.f32.gmra.mrb[0].mxu0 %v406
    %v473 = vpop.f32.mrb[0].mxu0
    %v474 = vadd.f32 0.0, %v473
    %v475 = vpop.f32.mrb[0].mxu0
    %476 = vdwg.mxu0
    %s477 = scalar_lea.vmem [#allocation7], 16
    %v478 = vld [vmem:[%s477] sm:$0xff]
    %v479 = vsub.f32 %v474, %v478
    %v480 = vmul.f32 %v479, %v479
    %v481 = vadd.f32 %v353, %v480
    %s482 = sadd.s32 %s64, 3
    %s483 = sld [smem:[#allocation3 + %s482]]
    %v484 = vstv %s483
    %vm485 = vcmp.eq.s32.totalorder %v85, %v484
    %vm486 = vcmp.eq.s32.totalorder %v86, %v484
    %vm487 = vcmp.eq.s32.totalorder %v87, %v484
    %vm488 = vcmp.eq.s32.totalorder %v88, %v484
    %vm489 = vcmp.eq.s32.totalorder %v89, %v484
    %vm490 = vcmp.eq.s32.totalorder %v90, %v484
    %vm491 = vcmp.eq.s32.totalorder %v91, %v484
    %vm492 = vcmp.eq.s32.totalorder %v92, %v484
    %vm493 = vcmp.eq.s32.totalorder %v93, %v484
    %vm494 = vcmp.eq.s32.totalorder %v94, %v484
    %vm495 = vcmp.eq.s32.totalorder %v95, %v484
    %vm496 = vcmp.eq.s32.totalorder %v96, %v484
    %vm497 = vcmp.eq.s32.totalorder %v97, %v484
    %vm498 = vcmp.eq.s32.totalorder %v98, %v484
    %vm499 = vcmp.eq.s32.totalorder %v99, %v484
    %vm500 = vcmp.eq.s32.totalorder %v100, %v484
    %v501 = vsel %vm485, 1, 0
    %v502 = vsel %vm486, 1, 0
    %v503 = vsel %vm487, 1, 0
    %v504 = vsel %vm488, 1, 0
    %v505 = vsel %vm489, 1, 0
    %v506 = vsel %vm490, 1, 0
    %v507 = vsel %vm491, 1, 0
    %v508 = vsel %vm492, 1, 0
    %v509 = vsel %vm493, 1, 0
    %v510 = vsel %vm494, 1, 0
    %v511 = vsel %vm495, 1, 0
    %v512 = vsel %vm496, 1, 0
    %v513 = vsel %vm497, 1, 0
    %v514 = vsel %vm498, 1, 0
    %v515 = vsel %vm499, 1, 0
    %v516 = vsel %vm500, 1, 0
    %v517 = vcvt.s32.f32 %v501
    %v518 = vcvt.s32.f32 %v502
    %v519 = vcvt.s32.f32 %v503
    %v520 = vcvt.s32.f32 %v504
    %v521 = vcvt.s32.f32 %v505
    %v522 = vcvt.s32.f32 %v506
    %v523 = vcvt.s32.f32 %v507
    %v524 = vcvt.s32.f32 %v508
    %v525 = vcvt.s32.f32 %v509
    %v526 = vcvt.s32.f32 %v510
    %v527 = vcvt.s32.f32 %v511
    %v528 = vcvt.s32.f32 %v512
    %v529 = vcvt.s32.f32 %v513
    %v530 = vcvt.s32.f32 %v514
    %v531 = vcvt.s32.f32 %v515
    %v532 = vcvt.s32.f32 %v516
    %s533 = scalar_lea.vmem [#allocation4], 24
    %v534 = vld [vmem:[%s533] sm:$0xff]
    %535 = vmatprep.subr.mxu0 0.0
    %536 = vmatpush1.msra.mxu0 %v517
    %537 = vmatprep.subr.mxu0 0.0
    %538 = vmatpush1.msra.mxu0 %v518
    %539 = vmatprep.subr.mxu0 0.0
    %540 = vmatpush1.msra.mxu0 %v519
    %541 = vmatprep.subr.mxu0 0.0
    %542 = vmatpush1.msra.mxu0 %v520
    %543 = vmatprep.subr.mxu0 0.0
    %544 = vmatpush1.msra.mxu0 %v521
    %545 = vmatprep.subr.mxu0 0.0
    %546 = vmatpush1.msra.mxu0 %v522
    %547 = vmatprep.subr.mxu0 0.0
    %548 = vmatpush1.msra.mxu0 %v523
    %549 = vmatprep.subr.mxu0 0.0
    %550 = vmatpush1.msra.mxu0 %v524
    %551 = vmatprep.subr.mxu0 0.0
    %552 = vmatpush1.msra.mxu0 %v525
    %553 = vmatprep.subr.mxu0 0.0
    %554 = vmatpush1.msra.mxu0 %v526
    %555 = vmatprep.subr.mxu0 0.0
    %556 = vmatpush1.msra.mxu0 %v527
    %557 = vmatprep.subr.mxu0 0.0
    %558 = vmatpush1.msra.mxu0 %v528
    %559 = vmatprep.subr.mxu0 0.0
    %560 = vmatpush1.msra.mxu0 %v529
    %561 = vmatprep.subr.mxu0 0.0
    %562 = vmatpush1.msra.mxu0 %v530
    %563 = vmatprep.subr.mxu0 0.0
    %564 = vmatpush1.msra.mxu0 %v531
    %565 = vmatprep.subr.mxu0 0.0
    %566 = vmatpush1.msra.mxu0 %v532
    %567 = vmatprep.subr.mxu0 0.0
    %568 = vmatpush1.msra.mxu0 0.0
    %569 = vmatprep.subr.mxu0 0.0
    %570 = vmatpush1.msra.mxu0 0.0
    %571 = vmatprep.subr.mxu0 0.0
    %572 = vmatpush1.msra.mxu0 0.0
    %573 = vmatprep.subr.mxu0 0.0
    %574 = vmatpush1.msra.mxu0 0.0
    %575 = vmatprep.subr.mxu0 0.0
    %576 = vmatpush1.msra.mxu0 0.0
    %577 = vmatprep.subr.mxu0 0.0
    %578 = vmatpush1.msra.mxu0 0.0
    %579 = vmatprep.subr.mxu0 0.0
    %580 = vmatpush1.msra.mxu0 0.0
    %581 = vmatprep.subr.mxu0 0.0
    %582 = vmatpush1.msra.mxu0 0.0
    %583 = vmatprep.subr.mxu0 0.0
    %584 = vmatpush1.msra.mxu0 0.0
    %585 = vmatprep.subr.mxu0 0.0
    %586 = vmatpush1.msra.mxu0 0.0
    %587 = vmatprep.subr.mxu0 0.0
    %588 = vmatpush1.msra.mxu0 0.0
    %589 = vmatprep.subr.mxu0 0.0
    %590 = vmatpush1.msra.mxu0 0.0
    %591 = vmatprep.subr.mxu0 0.0
    %592 = vmatpush1.msra.mxu0 0.0
    %593 = vmatprep.subr.mxu0 0.0
    %594 = vmatpush1.msra.mxu0 0.0
    %595 = vmatprep.subr.mxu0 0.0
    %596 = vmatpush1.msra.mxu0 0.0
    %597 = vmatprep.subr.mxu0 0.0
    %598 = vmatpush1.msra.mxu0 0.0
    %599 = vmatprep.mubr.f32.mxu0 0.0
    %600 = vmatmul.mubr.f32.gmra.mrb[0].mxu0 %v534
    %v601 = vpop.f32.mrb[0].mxu0
    %v602 = vadd.f32 0.0, %v601
    %v603 = vpop.f32.mrb[0].mxu0
    %604 = vdwg.mxu0
    %s605 = scalar_lea.vmem [#allocation7], 24
    %v606 = vld [vmem:[%s605] sm:$0xff]
    %v607 = vsub.f32 %v602, %v606
    %v608 = vmul.f32 %v607, %v607
    %v609 = vadd.f32 %v481, %v608
    %s610 = sadd.s32 %s64, 4
    %s611 = sld [smem:[#allocation3 + %s610]]
    %v612 = vstv %s611
    %vm613 = vcmp.eq.s32.totalorder %v85, %v612
    %vm614 = vcmp.eq.s32.totalorder %v86, %v612
    %vm615 = vcmp.eq.s32.totalorder %v87, %v612
    %vm616 = vcmp.eq.s32.totalorder %v88, %v612
    %vm617 = vcmp.eq.s32.totalorder %v89, %v612
    %vm618 = vcmp.eq.s32.totalorder %v90, %v612
    %vm619 = vcmp.eq.s32.totalorder %v91, %v612
    %vm620 = vcmp.eq.s32.totalorder %v92, %v612
    %vm621 = vcmp.eq.s32.totalorder %v93, %v612
    %vm622 = vcmp.eq.s32.totalorder %v94, %v612
    %vm623 = vcmp.eq.s32.totalorder %v95, %v612
    %vm624 = vcmp.eq.s32.totalorder %v96, %v612
    %vm625 = vcmp.eq.s32.totalorder %v97, %v612
    %vm626 = vcmp.eq.s32.totalorder %v98, %v612
    %vm627 = vcmp.eq.s32.totalorder %v99, %v612
    %vm628 = vcmp.eq.s32.totalorder %v100, %v612
    %v629 = vsel %vm613, 1, 0
    %v630 = vsel %vm614, 1, 0
    %v631 = vsel %vm615, 1, 0
    %v632 = vsel %vm616, 1, 0
    %v633 = vsel %vm617, 1, 0
    %v634 = vsel %vm618, 1, 0
    %v635 = vsel %vm619, 1, 0
    %v636 = vsel %vm620, 1, 0
    %v637 = vsel %vm621, 1, 0
    %v638 = vsel %vm622, 1, 0
    %v639 = vsel %vm623, 1, 0
    %v640 = vsel %vm624, 1, 0
    %v641 = vsel %vm625, 1, 0
    %v642 = vsel %vm626, 1, 0
    %v643 = vsel %vm627, 1, 0
    %v644 = vsel %vm628, 1, 0
    %v645 = vcvt.s32.f32 %v629
    %v646 = vcvt.s32.f32 %v630
    %v647 = vcvt.s32.f32 %v631
    %v648 = vcvt.s32.f32 %v632
    %v649 = vcvt.s32.f32 %v633
    %v650 = vcvt.s32.f32 %v634
    %v651 = vcvt.s32.f32 %v635
    %v652 = vcvt.s32.f32 %v636
    %v653 = vcvt.s32.f32 %v637
    %v654 = vcvt.s32.f32 %v638
    %v655 = vcvt.s32.f32 %v639
    %v656 = vcvt.s32.f32 %v640
    %v657 = vcvt.s32.f32 %v641
    %v658 = vcvt.s32.f32 %v642
    %v659 = vcvt.s32.f32 %v643
    %v660 = vcvt.s32.f32 %v644
    %s661 = scalar_lea.vmem [#allocation4], 32
    %v662 = vld [vmem:[%s661] sm:$0xff]
    %663 = vmatprep.subr.mxu0 0.0
    %664 = vmatpush1.msra.mxu0 %v645
    %665 = vmatprep.subr.mxu0 0.0
    %666 = vmatpush1.msra.mxu0 %v646
    %667 = vmatprep.subr.mxu0 0.0
    %668 = vmatpush1.msra.mxu0 %v647
    %669 = vmatprep.subr.mxu0 0.0
    %670 = vmatpush1.msra.mxu0 %v648
    %671 = vmatprep.subr.mxu0 0.0
    %672 = vmatpush1.msra.mxu0 %v649
    %673 = vmatprep.subr.mxu0 0.0
    %674 = vmatpush1.msra.mxu0 %v650
    %675 = vmatprep.subr.mxu0 0.0
    %676 = vmatpush1.msra.mxu0 %v651
    %677 = vmatprep.subr.mxu0 0.0
    %678 = vmatpush1.msra.mxu0 %v652
    %679 = vmatprep.subr.mxu0 0.0
    %680 = vmatpush1.msra.mxu0 %v653
    %681 = vmatprep.subr.mxu0 0.0
    %682 = vmatpush1.msra.mxu0 %v654
    %683 = vmatprep.subr.mxu0 0.0
    %684 = vmatpush1.msra.mxu0 %v655
    %685 = vmatprep.subr.mxu0 0.0
    %686 = vmatpush1.msra.mxu0 %v656
    %687 = vmatprep.subr.mxu0 0.0
    %688 = vmatpush1.msra.mxu0 %v657
    %689 = vmatprep.subr.mxu0 0.0
    %690 = vmatpush1.msra.mxu0 %v658
    %691 = vmatprep.subr.mxu0 0.0
    %692 = vmatpush1.msra.mxu0 %v659
    %693 = vmatprep.subr.mxu0 0.0
    %694 = vmatpush1.msra.mxu0 %v660
    %695 = vmatprep.subr.mxu0 0.0
    %696 = vmatpush1.msra.mxu0 0.0
    %697 = vmatprep.subr.mxu0 0.0
    %698 = vmatpush1.msra.mxu0 0.0
    %699 = vmatprep.subr.mxu0 0.0
    %700 = vmatpush1.msra.mxu0 0.0
    %701 = vmatprep.subr.mxu0 0.0
    %702 = vmatpush1.msra.mxu0 0.0
    %703 = vmatprep.subr.mxu0 0.0
    %704 = vmatpush1.msra.mxu0 0.0
    %705 = vmatprep.subr.mxu0 0.0
    %706 = vmatpush1.msra.mxu0 0.0
    %707 = vmatprep.subr.mxu0 0.0
    %708 = vmatpush1.msra.mxu0 0.0
    %709 = vmatprep.subr.mxu0 0.0
    %710 = vmatpush1.msra.mxu0 0.0
    %711 = vmatprep.subr.mxu0 0.0
    %712 = vmatpush1.msra.mxu0 0.0
    %713 = vmatprep.subr.mxu0 0.0
    %714 = vmatpush1.msra.mxu0 0.0
    %715 = vmatprep.subr.mxu0 0.0
    %716 = vmatpush1.msra.mxu0 0.0
    %717 = vmatprep.subr.mxu0 0.0
    %718 = vmatpush1.msra.mxu0 0.0
    %719 = vmatprep.subr.mxu0 0.0
    %720 = vmatpush1.msra.mxu0 0.0
    %721 = vmatprep.subr.mxu0 0.0
    %722 = vmatpush1.msra.mxu0 0.0
    %723 = vmatprep.subr.mxu0 0.0
    %724 = vmatpush1.msra.mxu0 0.0
    %725 = vmatprep.subr.mxu0 0.0
    %726 = vmatpush1.msra.mxu0 0.0
    %727 = vmatprep.mubr.f32.mxu0 0.0
    %728 = vmatmul.mubr.f32.gmra.mrb[0].mxu0 %v662
    %v729 = vpop.f32.mrb[0].mxu0
    %v730 = vadd.f32 0.0, %v729
    %v731 = vpop.f32.mrb[0].mxu0
    %732 = vdwg.mxu0
    %s733 = scalar_lea.vmem [#allocation7], 32
    %v734 = vld [vmem:[%s733] sm:$0xff]
    %v735 = vsub.f32 %v730, %v734
    %v736 = vmul.f32 %v735, %v735
    %v737 = vadd.f32 %v609, %v736
    %s738 = sadd.s32 %s64, 5
    %s739 = sld [smem:[#allocation3 + %s738]]
    %v740 = vstv %s739
    %vm741 = vcmp.eq.s32.totalorder %v85, %v740
    %vm742 = vcmp.eq.s32.totalorder %v86, %v740
    %vm743 = vcmp.eq.s32.totalorder %v87, %v740
    %vm744 = vcmp.eq.s32.totalorder %v88, %v740
    %vm745 = vcmp.eq.s32.totalorder %v89, %v740
    %vm746 = vcmp.eq.s32.totalorder %v90, %v740
    %vm747 = vcmp.eq.s32.totalorder %v91, %v740
    %vm748 = vcmp.eq.s32.totalorder %v92, %v740
    %vm749 = vcmp.eq.s32.totalorder %v93, %v740
    %vm750 = vcmp.eq.s32.totalorder %v94, %v740
    %vm751 = vcmp.eq.s32.totalorder %v95, %v740
    %vm752 = vcmp.eq.s32.totalorder %v96, %v740
    %vm753 = vcmp.eq.s32.totalorder %v97, %v740
    %vm754 = vcmp.eq.s32.totalorder %v98, %v740
    %vm755 = vcmp.eq.s32.totalorder %v99, %v740
    %vm756 = vcmp.eq.s32.totalorder %v100, %v740
    %v757 = vsel %vm741, 1, 0
    %v758 = vsel %vm742, 1, 0
    %v759 = vsel %vm743, 1, 0
    %v760 = vsel %vm744, 1, 0
    %v761 = vsel %vm745, 1, 0
    %v762 = vsel %vm746, 1, 0
    %v763 = vsel %vm747, 1, 0
    %v764 = vsel %vm748, 1, 0
    %v765 = vsel %vm749, 1, 0
    %v766 = vsel %vm750, 1, 0
    %v767 = vsel %vm751, 1, 0
    %v768 = vsel %vm752, 1, 0
    %v769 = vsel %vm753, 1, 0
    %v770 = vsel %vm754, 1, 0
    %v771 = vsel %vm755, 1, 0
    %v772 = vsel %vm756, 1, 0
    %v773 = vcvt.s32.f32 %v757
    %v774 = vcvt.s32.f32 %v758
    %v775 = vcvt.s32.f32 %v759
    %v776 = vcvt.s32.f32 %v760
    %v777 = vcvt.s32.f32 %v761
    %v778 = vcvt.s32.f32 %v762
    %v779 = vcvt.s32.f32 %v763
    %v780 = vcvt.s32.f32 %v764
    %v781 = vcvt.s32.f32 %v765
    %v782 = vcvt.s32.f32 %v766
    %v783 = vcvt.s32.f32 %v767
    %v784 = vcvt.s32.f32 %v768
    %v785 = vcvt.s32.f32 %v769
    %v786 = vcvt.s32.f32 %v770
    %v787 = vcvt.s32.f32 %v771
    %v788 = vcvt.s32.f32 %v772
    %s789 = scalar_lea.vmem [#allocation4], 40
    %v790 = vld [vmem:[%s789] sm:$0xff]
    %791 = vmatprep.subr.mxu0 0.0
    %792 = vmatpush1.msra.mxu0 %v773
    %793 = vmatprep.subr.mxu0 0.0
    %794 = vmatpush1.msra.mxu0 %v774
    %795 = vmatprep.subr.mxu0 0.0
    %796 = vmatpush1.msra.mxu0 %v775
    %797 = vmatprep.subr.mxu0 0.0
    %798 = vmatpush1.msra.mxu0 %v776
    %799 = vmatprep.subr.mxu0 0.0
    %800 = vmatpush1.msra.mxu0 %v777
    %801 = vmatprep.subr.mxu0 0.0
    %802 = vmatpush1.msra.mxu0 %v778
    %803 = vmatprep.subr.mxu0 0.0
    %804 = vmatpush1.msra.mxu0 %v779
    %805 = vmatprep.subr.mxu0 0.0
    %806 = vmatpush1.msra.mxu0 %v780
    %807 = vmatprep.subr.mxu0 0.0
    %808 = vmatpush1.msra.mxu0 %v781
    %809 = vmatprep.subr.mxu0 0.0
    %810 = vmatpush1.msra.mxu0 %v782
    %811 = vmatprep.subr.mxu0 0.0
    %812 = vmatpush1.msra.mxu0 %v783
    %813 = vmatprep.subr.mxu0 0.0
    %814 = vmatpush1.msra.mxu0 %v784
    %815 = vmatprep.subr.mxu0 0.0
    %816 = vmatpush1.msra.mxu0 %v785
    %817 = vmatprep.subr.mxu0 0.0
    %818 = vmatpush1.msra.mxu0 %v786
    %819 = vmatprep.subr.mxu0 0.0
    %820 = vmatpush1.msra.mxu0 %v787
    %821 = vmatprep.subr.mxu0 0.0
    %822 = vmatpush1.msra.mxu0 %v788
    %823 = vmatprep.subr.mxu0 0.0
    %824 = vmatpush1.msra.mxu0 0.0
    %825 = vmatprep.subr.mxu0 0.0
    %826 = vmatpush1.msra.mxu0 0.0
    %827 = vmatprep.subr.mxu0 0.0
    %828 = vmatpush1.msra.mxu0 0.0
    %829 = vmatprep.subr.mxu0 0.0
    %830 = vmatpush1.msra.mxu0 0.0
    %831 = vmatprep.subr.mxu0 0.0
    %832 = vmatpush1.msra.mxu0 0.0
    %833 = vmatprep.subr.mxu0 0.0
    %834 = vmatpush1.msra.mxu0 0.0
    %835 = vmatprep.subr.mxu0 0.0
    %836 = vmatpush1.msra.mxu0 0.0
    %837 = vmatprep.subr.mxu0 0.0
    %838 = vmatpush1.msra.mxu0 0.0
    %839 = vmatprep.subr.mxu0 0.0
    %840 = vmatpush1.msra.mxu0 0.0
    %841 = vmatprep.subr.mxu0 0.0
    %842 = vmatpush1.msra.mxu0 0.0
    %843 = vmatprep.subr.mxu0 0.0
    %844 = vmatpush1.msra.mxu0 0.0
    %845 = vmatprep.subr.mxu0 0.0
    %846 = vmatpush1.msra.mxu0 0.0
    %847 = vmatprep.subr.mxu0 0.0
    %848 = vmatpush1.msra.mxu0 0.0
    %849 = vmatprep.subr.mxu0 0.0
    %850 = vmatpush1.msra.mxu0 0.0
    %851 = vmatprep.subr.mxu0 0.0
    %852 = vmatpush1.msra.mxu0 0.0
    %853 = vmatprep.subr.mxu0 0.0
    %854 = vmatpush1.msra.mxu0 0.0
    %855 = vmatprep.mubr.f32.mxu0 0.0
    %856 = vmatmul.mubr.f32.gmra.mrb[0].mxu0 %v790
    %v857 = vpop.f32.mrb[0].mxu0
    %v858 = vadd.f32 0.0, %v857
    %v859 = vpop.f32.mrb[0].mxu0
    %860 = vdwg.mxu0
    %s861 = scalar_lea.vmem [#allocation7], 40
    %v862 = vld [vmem:[%s861] sm:$0xff]
    %v863 = vsub.f32 %v858, %v862
    %v864 = vmul.f32 %v863, %v863
    %v865 = vadd.f32 %v737, %v864
    %s866 = sadd.s32 %s64, 6
    %s867 = sld [smem:[#allocation3 + %s866]]
    %v868 = vstv %s867
    %vm869 = vcmp.eq.s32.totalorder %v85, %v868
    %vm870 = vcmp.eq.s32.totalorder %v86, %v868
    %vm871 = vcmp.eq.s32.totalorder %v87, %v868
    %vm872 = vcmp.eq.s32.totalorder %v88, %v868
    %vm873 = vcmp.eq.s32.totalorder %v89, %v868
    %vm874 = vcmp.eq.s32.totalorder %v90, %v868
    %vm875 = vcmp.eq.s32.totalorder %v91, %v868
    %vm876 = vcmp.eq.s32.totalorder %v92, %v868
    %vm877 = vcmp.eq.s32.totalorder %v93, %v868
    %vm878 = vcmp.eq.s32.totalorder %v94, %v868
    %vm879 = vcmp.eq.s32.totalorder %v95, %v868
    %vm880 = vcmp.eq.s32.totalorder %v96, %v868
    %vm881 = vcmp.eq.s32.totalorder %v97, %v868
    %vm882 = vcmp.eq.s32.totalorder %v98, %v868
    %vm883 = vcmp.eq.s32.totalorder %v99, %v868
    %vm884 = vcmp.eq.s32.totalorder %v100, %v868
    %v885 = vsel %vm869, 1, 0
    %v886 = vsel %vm870, 1, 0
    %v887 = vsel %vm871, 1, 0
    %v888 = vsel %vm872, 1, 0
    %v889 = vsel %vm873, 1, 0
    %v890 = vsel %vm874, 1, 0
    %v891 = vsel %vm875, 1, 0
    %v892 = vsel %vm876, 1, 0
    %v893 = vsel %vm877, 1, 0
    %v894 = vsel %vm878, 1, 0
    %v895 = vsel %vm879, 1, 0
    %v896 = vsel %vm880, 1, 0
    %v897 = vsel %vm881, 1, 0
    %v898 = vsel %vm882, 1, 0
    %v899 = vsel %vm883, 1, 0
    %v900 = vsel %vm884, 1, 0
    %v901 = vcvt.s32.f32 %v885
    %v902 = vcvt.s32.f32 %v886
    %v903 = vcvt.s32.f32 %v887
    %v904 = vcvt.s32.f32 %v888
    %v905 = vcvt.s32.f32 %v889
    %v906 = vcvt.s32.f32 %v890
    %v907 = vcvt.s32.f32 %v891
    %v908 = vcvt.s32.f32 %v892
    %v909 = vcvt.s32.f32 %v893
    %v910 = vcvt.s32.f32 %v894
    %v911 = vcvt.s32.f32 %v895
    %v912 = vcvt.s32.f32 %v896
    %v913 = vcvt.s32.f32 %v897
    %v914 = vcvt.s32.f32 %v898
    %v915 = vcvt.s32.f32 %v899
    %v916 = vcvt.s32.f32 %v900
    %s917 = scalar_lea.vmem [#allocation4], 48
    %v918 = vld [vmem:[%s917] sm:$0xff]
    %919 = vmatprep.subr.mxu0 0.0
    %920 = vmatpush1.msra.mxu0 %v901
    %921 = vmatprep.subr.mxu0 0.0
    %922 = vmatpush1.msra.mxu0 %v902
    %923 = vmatprep.subr.mxu0 0.0
    %924 = vmatpush1.msra.mxu0 %v903
    %925 = vmatprep.subr.mxu0 0.0
    %926 = vmatpush1.msra.mxu0 %v904
    %927 = vmatprep.subr.mxu0 0.0
    %928 = vmatpush1.msra.mxu0 %v905
    %929 = vmatprep.subr.mxu0 0.0
    %930 = vmatpush1.msra.mxu0 %v906
    %931 = vmatprep.subr.mxu0 0.0
    %932 = vmatpush1.msra.mxu0 %v907
    %933 = vmatprep.subr.mxu0 0.0
    %934 = vmatpush1.msra.mxu0 %v908
    %935 = vmatprep.subr.mxu0 0.0
    %936 = vmatpush1.msra.mxu0 %v909
    %937 = vmatprep.subr.mxu0 0.0
    %938 = vmatpush1.msra.mxu0 %v910
    %939 = vmatprep.subr.mxu0 0.0
    %940 = vmatpush1.msra.mxu0 %v911
    %941 = vmatprep.subr.mxu0 0.0
    %942 = vmatpush1.msra.mxu0 %v912
    %943 = vmatprep.subr.mxu0 0.0
    %944 = vmatpush1.msra.mxu0 %v913
    %945 = vmatprep.subr.mxu0 0.0
    %946 = vmatpush1.msra.mxu0 %v914
    %947 = vmatprep.subr.mxu0 0.0
    %948 = vmatpush1.msra.mxu0 %v915
    %949 = vmatprep.subr.mxu0 0.0
    %950 = vmatpush1.msra.mxu0 %v916
    %951 = vmatprep.subr.mxu0 0.0
    %952 = vmatpush1.msra.mxu0 0.0
    %953 = vmatprep.subr.mxu0 0.0
    %954 = vmatpush1.msra.mxu0 0.0
    %955 = vmatprep.subr.mxu0 0.0
    %956 = vmatpush1.msra.mxu0 0.0
    %957 = vmatprep.subr.mxu0 0.0
    %958 = vmatpush1.msra.mxu0 0.0
    %959 = vmatprep.subr.mxu0 0.0
    %960 = vmatpush1.msra.mxu0 0.0
    %961 = vmatprep.subr.mxu0 0.0
    %962 = vmatpush1.msra.mxu0 0.0
    %963 = vmatprep.subr.mxu0 0.0
    %964 = vmatpush1.msra.mxu0 0.0
    %965 = vmatprep.subr.mxu0 0.0
    %966 = vmatpush1.msra.mxu0 0.0
    %967 = vmatprep.subr.mxu0 0.0
    %968 = vmatpush1.msra.mxu0 0.0
    %969 = vmatprep.subr.mxu0 0.0
    %970 = vmatpush1.msra.mxu0 0.0
    %971 = vmatprep.subr.mxu0 0.0
    %972 = vmatpush1.msra.mxu0 0.0
    %973 = vmatprep.subr.mxu0 0.0
    %974 = vmatpush1.msra.mxu0 0.0
    %975 = vmatprep.subr.mxu0 0.0
    %976 = vmatpush1.msra.mxu0 0.0
    %977 = vmatprep.subr.mxu0 0.0
    %978 = vmatpush1.msra.mxu0 0.0
    %979 = vmatprep.subr.mxu0 0.0
    %980 = vmatpush1.msra.mxu0 0.0
    %981 = vmatprep.subr.mxu0 0.0
    %982 = vmatpush1.msra.mxu0 0.0
    %983 = vmatprep.mubr.f32.mxu0 0.0
    %984 = vmatmul.mubr.f32.gmra.mrb[0].mxu0 %v918
    %v985 = vpop.f32.mrb[0].mxu0
    %v986 = vadd.f32 0.0, %v985
    %v987 = vpop.f32.mrb[0].mxu0
    %988 = vdwg.mxu0
    %s989 = scalar_lea.vmem [#allocation7], 48
    %v990 = vld [vmem:[%s989] sm:$0xff]
    %v991 = vsub.f32 %v986, %v990
    %v992 = vmul.f32 %v991, %v991
    %v993 = vadd.f32 %v865, %v992
    %s994 = sadd.s32 %s64, 7
    %s995 = sld [smem:[#allocation3 + %s994]]
    %v996 = vstv %s995
    %vm997 = vcmp.eq.s32.totalorder %v85, %v996
    %vm998 = vcmp.eq.s32.totalorder %v86, %v996
    %vm999 = vcmp.eq.s32.totalorder %v87, %v996
    %vm1000 = vcmp.eq.s32.totalorder %v88, %v996
    %vm1001 = vcmp.eq.s32.totalorder %v89, %v996
    %vm1002 = vcmp.eq.s32.totalorder %v90, %v996
    %vm1003 = vcmp.eq.s32.totalorder %v91, %v996
    %vm1004 = vcmp.eq.s32.totalorder %v92, %v996
    %vm1005 = vcmp.eq.s32.totalorder %v93, %v996
    %vm1006 = vcmp.eq.s32.totalorder %v94, %v996
    %vm1007 = vcmp.eq.s32.totalorder %v95, %v996
    %vm1008 = vcmp.eq.s32.totalorder %v96, %v996
    %vm1009 = vcmp.eq.s32.totalorder %v97, %v996
    %vm1010 = vcmp.eq.s32.totalorder %v98, %v996
    %vm1011 = vcmp.eq.s32.totalorder %v99, %v996
    %vm1012 = vcmp.eq.s32.totalorder %v100, %v996
    %v1013 = vsel %vm997, 1, 0
    %v1014 = vsel %vm998, 1, 0
    %v1015 = vsel %vm999, 1, 0
    %v1016 = vsel %vm1000, 1, 0
    %v1017 = vsel %vm1001, 1, 0
    %v1018 = vsel %vm1002, 1, 0
    %v1019 = vsel %vm1003, 1, 0
    %v1020 = vsel %vm1004, 1, 0
    %v1021 = vsel %vm1005, 1, 0
    %v1022 = vsel %vm1006, 1, 0
    %v1023 = vsel %vm1007, 1, 0
    %v1024 = vsel %vm1008, 1, 0
    %v1025 = vsel %vm1009, 1, 0
    %v1026 = vsel %vm1010, 1, 0
    %v1027 = vsel %vm1011, 1, 0
    %v1028 = vsel %vm1012, 1, 0
    %v1029 = vcvt.s32.f32 %v1013
    %v1030 = vcvt.s32.f32 %v1014
    %v1031 = vcvt.s32.f32 %v1015
    %v1032 = vcvt.s32.f32 %v1016
    %v1033 = vcvt.s32.f32 %v1017
    %v1034 = vcvt.s32.f32 %v1018
    %v1035 = vcvt.s32.f32 %v1019
    %v1036 = vcvt.s32.f32 %v1020
    %v1037 = vcvt.s32.f32 %v1021
    %v1038 = vcvt.s32.f32 %v1022
    %v1039 = vcvt.s32.f32 %v1023
    %v1040 = vcvt.s32.f32 %v1024
    %v1041 = vcvt.s32.f32 %v1025
    %v1042 = vcvt.s32.f32 %v1026
    %v1043 = vcvt.s32.f32 %v1027
    %v1044 = vcvt.s32.f32 %v1028
    %s1045 = scalar_lea.vmem [#allocation4], 56
    %v1046 = vld [vmem:[%s1045] sm:$0xff]
    %1047 = vmatprep.subr.mxu0 0.0
    %1048 = vmatpush1.msra.mxu0 %v1029
    %1049 = vmatprep.subr.mxu0 0.0
    %1050 = vmatpush1.msra.mxu0 %v1030
    %1051 = vmatprep.subr.mxu0 0.0
    %1052 = vmatpush1.msra.mxu0 %v1031
    %1053 = vmatprep.subr.mxu0 0.0
    %1054 = vmatpush1.msra.mxu0 %v1032
    %1055 = vmatprep.subr.mxu0 0.0
    %1056 = vmatpush1.msra.mxu0 %v1033
    %1057 = vmatprep.subr.mxu0 0.0
    %1058 = vmatpush1.msra.mxu0 %v1034
    %1059 = vmatprep.subr.mxu0 0.0
    %1060 = vmatpush1.msra.mxu0 %v1035
    %1061 = vmatprep.subr.mxu0 0.0
    %1062 = vmatpush1.msra.mxu0 %v1036
    %1063 = vmatprep.subr.mxu0 0.0
    %1064 = vmatpush1.msra.mxu0 %v1037
    %1065 = vmatprep.subr.mxu0 0.0
    %1066 = vmatpush1.msra.mxu0 %v1038
    %1067 = vmatprep.subr.mxu0 0.0
    %1068 = vmatpush1.msra.mxu0 %v1039
    %1069 = vmatprep.subr.mxu0 0.0
    %1070 = vmatpush1.msra.mxu0 %v1040
    %1071 = vmatprep.subr.mxu0 0.0
    %1072 = vmatpush1.msra.mxu0 %v1041
    %1073 = vmatprep.subr.mxu0 0.0
    %1074 = vmatpush1.msra.mxu0 %v1042
    %1075 = vmatprep.subr.mxu0 0.0
    %1076 = vmatpush1.msra.mxu0 %v1043
    %1077 = vmatprep.subr.mxu0 0.0
    %1078 = vmatpush1.msra.mxu0 %v1044
    %1079 = vmatprep.subr.mxu0 0.0
    %1080 = vmatpush1.msra.mxu0 0.0
    %1081 = vmatprep.subr.mxu0 0.0
    %1082 = vmatpush1.msra.mxu0 0.0
    %1083 = vmatprep.subr.mxu0 0.0
    %1084 = vmatpush1.msra.mxu0 0.0
    %1085 = vmatprep.subr.mxu0 0.0
    %1086 = vmatpush1.msra.mxu0 0.0
    %1087 = vmatprep.subr.mxu0 0.0
    %1088 = vmatpush1.msra.mxu0 0.0
    %1089 = vmatprep.subr.mxu0 0.0
    %1090 = vmatpush1.msra.mxu0 0.0
    %1091 = vmatprep.subr.mxu0 0.0
    %1092 = vmatpush1.msra.mxu0 0.0
    %1093 = vmatprep.subr.mxu0 0.0
    %1094 = vmatpush1.msra.mxu0 0.0
    %1095 = vmatprep.subr.mxu0 0.0
    %1096 = vmatpush1.msra.mxu0 0.0
    %1097 = vmatprep.subr.mxu0 0.0
    %1098 = vmatpush1.msra.mxu0 0.0
    %1099 = vmatprep.subr.mxu0 0.0
    %1100 = vmatpush1.msra.mxu0 0.0
    %1101 = vmatprep.subr.mxu0 0.0
    %1102 = vmatpush1.msra.mxu0 0.0
    %1103 = vmatprep.subr.mxu0 0.0
    %1104 = vmatpush1.msra.mxu0 0.0
    %1105 = vmatprep.subr.mxu0 0.0
    %1106 = vmatpush1.msra.mxu0 0.0
    %1107 = vmatprep.subr.mxu0 0.0
    %1108 = vmatpush1.msra.mxu0 0.0
    %1109 = vmatprep.subr.mxu0 0.0
    %1110 = vmatpush1.msra.mxu0 0.0
    %1111 = vmatprep.mubr.f32.mxu0 0.0
    %1112 = vmatmul.mubr.f32.gmra.mrb[0].mxu0 %v1046
    %v1113 = vpop.f32.mrb[0].mxu0
    %v1114 = vadd.f32 0.0, %v1113
    %v1115 = vpop.f32.mrb[0].mxu0
    %1116 = vdwg.mxu0
    %s1117 = scalar_lea.vmem [#allocation7], 56
    %v1118 = vld [vmem:[%s1117] sm:$0xff]
    %v1119 = vsub.f32 %v1114, %v1118
    %v1120 = vmul.f32 %v1119, %v1119
    %v1121 = vadd.f32 %v993, %v1120
    %v1122 = vld [vmem:[#allocation9] sm:$0xff]
    %v1123 = vadd.f32 %v1122, %v1121
    %vm1124 = vcmask 130048
    %1125 = vst.msk [vmem:[#allocation9] sm:$0xff] %vm1124, %v1123
    // Predicated region
    $region22: #{tpu_custom_call.1} parent=1 // pred_check
      _
    $region23: #{tpu_custom_call.1} parent=1 // pred_check_branch
      %1127 = sbr.rel (0) target = $region25
    $region24: #{tpu_custom_call.1} parent=1 // pred_region
      %s1129 = ssub.s32 128, 128
      %1130 = vsyncadd [#allocation6], %s1129
      %s1132 = sshll.u32 [#allocation9], 4
      %s1133 = int_to_ptr.vmem [resolvable:$true] %s1132
      %1135 = dma.vmem_to_hbm [thread:$0]  %s1133, 128, %s3, [#allocation6]
    $region25: #{tpu_custom_call.1} parent=1 // pred_fallthru
      _
    // Predicated region
    $region26: #{tpu_custom_call.1} parent=1 // pred_check
      _
    $region27: #{tpu_custom_call.1} parent=1 // pred_check_branch
      %1137 = sbr.rel (0) target = $region29
    $region28: #{tpu_custom_call.1} parent=1 // pred_region
      %1138 = dma.done [#allocation6], 128
    $region29: #{tpu_custom_call.1} parent=1 // pred_fallthru
      _
    %1139 = vsyncpa [#allocation5], 1
    %1140 = vsyncpa [#allocation8], 1
    %1141 = vsyncpa [#allocation6], 1

</llo_original>
